<compile_context>
chip_gen: v7x
topology: tpu7x:2x2x1
jax: 0.10.0
libtpu: 0.0.40
codegen_flags: <defaults>
</compile_context>

<pallas_src>
import jax
import jax.numpy as jnp
from jax.experimental import pallas as pl
from jax.experimental.pallas import tpu as pltpu

D_IN = 100    # linear1 in/out features
D_OUT = 10    # linear2 out features
MAX_TM = 512  # batch rows per grid step once B grows past this


def mlp_kernel(x_ref, w1_ref, b1_ref, w2_ref, b2_ref, o_ref):
    # x: (TM, 100); w1: (100, 100); b1: (1, 100); w2: (100, 10); b2: (1, 10)
    x = x_ref[...]
    h = jnp.dot(x, w1_ref[...], preferred_element_type=jnp.float32)   # (TM, 100)
    h = jnp.maximum(h + b1_ref[...], 0.0) + x                         # ReLU + residual
    y = jnp.dot(h, w2_ref[...], preferred_element_type=jnp.float32)   # (TM, 10)
    o_ref[...] = (y + b2_ref[...]).astype(o_ref.dtype)


def prepare_params(w1, b1, w2, b2):
    """One-time conversion from PyTorch (out, in) layout to (in, out).

    Done outside the hot path so no per-call transpose/reshape ops remain.
    """
    w1t = jnp.asarray(w1, jnp.float32).T                 # (100, 100)
    w2t = jnp.asarray(w2, jnp.float32).T                 # (100, 10)
    b1r = jnp.asarray(b1, jnp.float32).reshape(1, D_IN)  # (1, 100)
    b2r = jnp.asarray(b2, jnp.float32).reshape(1, D_OUT)  # (1, 10)
    return w1t, b1r, w2t, b2r


@jax.jit
def simple_module_forward(x, w1t, b1, w2t, b2):
    """x: (B, 100) f32; params from prepare_params. Returns (B, 10) f32."""
    B = x.shape[0]
    tm = B if B <= MAX_TM else MAX_TM
    grid = (pl.cdiv(B, tm),)

    flops = 2 * B * D_IN * (D_IN + D_OUT) + 3 * B * D_IN + B * D_OUT
    bytes_accessed = 4 * (B * D_IN + D_IN * D_IN + D_IN
                          + D_IN * D_OUT + D_OUT + B * D_OUT)

    return pl.pallas_call(
        mlp_kernel,
        out_shape=jax.ShapeDtypeStruct((B, D_OUT), jnp.float32),
        grid=grid,
        in_specs=[
            pl.BlockSpec((tm, D_IN), lambda i: (i, 0)),      # x: tiled over batch
            pl.BlockSpec((D_IN, D_IN), lambda i: (0, 0)),    # W1: constant index -> VMEM-resident
            pl.BlockSpec((1, D_IN), lambda i: (0, 0)),       # b1
            pl.BlockSpec((D_IN, D_OUT), lambda i: (0, 0)),   # W2
            pl.BlockSpec((1, D_OUT), lambda i: (0, 0)),      # b2
        ],
        out_specs=pl.BlockSpec((tm, D_OUT), lambda i: (i, 0)),
        compiler_params=pltpu.CompilerParams(
            dimension_semantics=("parallel",)),
        cost_estimate=pl.CostEstimate(
            flops=flops, transcendentals=0, bytes_accessed=bytes_accessed),
    )(x, w1t, b1, w2t, b2)


def init_params(key):
    """Deterministic init mimicking torch.nn.Linear (uniform +/- 1/sqrt(fan_in))."""
    k1, k2, k3, k4 = jax.random.split(key, 4)
    bound = 1.0 / jnp.sqrt(100.0)
    w1 = jax.random.uniform(k1, (100, 100), jnp.float32, -bound, bound)  # (out, in)
    b1 = jax.random.uniform(k2, (100,), jnp.float32, -bound, bound)
    w2 = jax.random.uniform(k3, (10, 100), jnp.float32, -bound, bound)   # (out, in)
    b2 = jax.random.uniform(k4, (10,), jnp.float32, -bound, bound)
    return w1, b1, w2, b2


if __name__ == "__main__":
    key = jax.random.PRNGKey(0)
    kx, kp = jax.random.split(key)
    x = jax.random.normal(kx, (8, 100), jnp.float32)
    w1, b1, w2, b2 = init_params(kp)

    # One-time param preparation (outside the hot path).
    w1t, b1r, w2t, b2r = prepare_params(w1, b1, w2, b2)

    out = simple_module_forward(x, w1t, b1r, w2t, b2r)
    out = jax.block_until_ready(out)

    # Reference check in plain JAX (same math as the PyTorch module).
    ref = jnp.maximum(x @ w1.T + b1, 0.0) + x
    ref = ref @ w2.T + b2
    assert out.shape == (8, 10)
    assert jnp.allclose(out, ref, atol=1e-4, rtol=1e-4)

    print("KERNEL_OK")
</pallas_src>

<mosaic_0001>
module attributes {stable_mosaic.version = 11 : i64} {
  func.func @mlp_kernel(%arg0: i32, %arg1: memref<8x100xf32, #tpu.memory_space<vmem>>, %arg2: memref<100x100xf32, #tpu.memory_space<vmem>>, %arg3: memref<1x100xf32, #tpu.memory_space<vmem>>, %arg4: memref<100x10xf32, #tpu.memory_space<vmem>>, %arg5: memref<1x10xf32, #tpu.memory_space<vmem>>, %arg6: memref<8x10xf32, #tpu.memory_space<vmem>>) attributes {dimension_semantics = [#tpu.dimension_semantics<parallel>], iteration_bounds = array<i64: 1>, scalar_prefetch = 0 : i64, scratch_operands = 0 : i64, tpu.core_type = #tpu.core_type<tc>, window_params = [{transform_indices = @transform_0, window_bounds = array<i64: 8, 100>}, {pipeline_mode = #tpu.pipeline_mode<synchronous>, transform_indices = @transform_1, window_bounds = array<i64: 100, 100>}, {pipeline_mode = #tpu.pipeline_mode<synchronous>, transform_indices = @transform_2, window_bounds = array<i64: 1, 100>}, {pipeline_mode = #tpu.pipeline_mode<synchronous>, transform_indices = @transform_3, window_bounds = array<i64: 100, 10>}, {pipeline_mode = #tpu.pipeline_mode<synchronous>, transform_indices = @transform_4, window_bounds = array<i64: 1, 10>}, {transform_indices = @transform_5, window_bounds = array<i64: 8, 10>}]} {
    %c0 = arith.constant 0 : index
    %c0_0 = arith.constant 0 : index
    %0 = vector.load %arg1[%c0, %c0_0] : memref<8x100xf32, #tpu.memory_space<vmem>>, vector<8x100xf32>
    %c0_1 = arith.constant 0 : index
    %c0_2 = arith.constant 0 : index
    %1 = vector.load %arg2[%c0_1, %c0_2] : memref<100x100xf32, #tpu.memory_space<vmem>>, vector<100x100xf32>
    %cst = arith.constant dense<0.000000e+00> : vector<8x100xf32>
    %2 = tpu.matmul %0, %1, %cst {dimension_numbers = #tpu.dot_dimension_numbers<[1], [0], [0], [1], [0, 0, 1, 1], [], []>} : vector<8x100xf32>, vector<100x100xf32>, vector<8x100xf32> -> vector<8x100xf32>
    %c0_3 = arith.constant 0 : index
    %c0_4 = arith.constant 0 : index
    %3 = vector.load %arg3[%c0_3, %c0_4] : memref<1x100xf32, #tpu.memory_space<vmem>>, vector<1x100xf32>
    %4 = vector.broadcast %3 : vector<1x100xf32> to vector<8x100xf32>
    %5 = arith.addf %2, %4 : vector<8x100xf32>
    %cst_5 = arith.constant 0.000000e+00 : f32
    %6 = vector.broadcast %cst_5 : f32 to vector<8x100xf32>
    %7 = arith.maximumf %5, %6 : vector<8x100xf32>
    %8 = arith.addf %7, %0 : vector<8x100xf32>
    %c0_6 = arith.constant 0 : index
    %c0_7 = arith.constant 0 : index
    %9 = vector.load %arg4[%c0_6, %c0_7] : memref<100x10xf32, #tpu.memory_space<vmem>>, vector<100x10xf32>
    %cst_8 = arith.constant dense<0.000000e+00> : vector<8x10xf32>
    %10 = tpu.matmul %8, %9, %cst_8 {dimension_numbers = #tpu.dot_dimension_numbers<[1], [0], [0], [1], [0, 0, 1, 1], [], []>} : vector<8x100xf32>, vector<100x10xf32>, vector<8x10xf32> -> vector<8x10xf32>
    %c0_9 = arith.constant 0 : index
    %c0_10 = arith.constant 0 : index
    %11 = vector.load %arg5[%c0_9, %c0_10] : memref<1x10xf32, #tpu.memory_space<vmem>>, vector<1x10xf32>
    %12 = vector.broadcast %11 : vector<1x10xf32> to vector<8x10xf32>
    %13 = arith.addf %10, %12 : vector<8x10xf32>
    %c0_11 = arith.constant 0 : index
    %c0_12 = arith.constant 0 : index
    %14 = vector.load %arg6[%c0_11, %c0_12] : memref<8x10xf32, #tpu.memory_space<vmem>>, vector<8x10xf32>
    tpu.vector_store %arg6[%c0_11, %c0_12], %13 {strides = array<i32>} : memref<8x10xf32, #tpu.memory_space<vmem>>, vector<8x10xf32>,
    return
  }
  func.func @transform_0(%arg0: i32) -> (i32, i32) {
    %c0_i32 = arith.constant 0 : i32
    %c0_i32_0 = arith.constant 0 : i32
    return %arg0, %c0_i32 : i32, i32
  }
  func.func @transform_1(%arg0: i32) -> (i32, i32) {
    %c0_i32 = arith.constant 0 : i32
    %c0_i32_0 = arith.constant 0 : i32
    %c0_i32_1 = arith.constant 0 : i32
    return %c0_i32, %c0_i32_0 : i32, i32
  }
  func.func @transform_2(%arg0: i32) -> (i32, i32) {
    %c0_i32 = arith.constant 0 : i32
    %c0_i32_0 = arith.constant 0 : i32
    %c0_i32_1 = arith.constant 0 : i32
    return %c0_i32, %c0_i32_0 : i32, i32
  }
  func.func @transform_3(%arg0: i32) -> (i32, i32) {
    %c0_i32 = arith.constant 0 : i32
    %c0_i32_0 = arith.constant 0 : i32
    %c0_i32_1 = arith.constant 0 : i32
    return %c0_i32, %c0_i32_0 : i32, i32
  }
  func.func @transform_4(%arg0: i32) -> (i32, i32) {
    %c0_i32 = arith.constant 0 : i32
    %c0_i32_0 = arith.constant 0 : i32
    %c0_i32_1 = arith.constant 0 : i32
    return %c0_i32, %c0_i32_0 : i32, i32
  }
  func.func @transform_5(%arg0: i32) -> (i32, i32) {
    %c0_i32 = arith.constant 0 : i32
    %c0_i32_0 = arith.constant 0 : i32
    return %arg0, %c0_i32 : i32, i32
  }
}

</mosaic_0001>

<llo_original>
// kernel: simple_module_forward.1
$region0: #{simple_module_forward.1}
  #allocation0 [shape = 'u32[]', space=smem, size = 0x4, offset = 0x4, fixed_abs, tag = 'smem constant byte address 0x4 - core index']
  #allocation1 [shape = 'u32[144,128]{1,0:T(1,128)}', space=vmem, size = 0x12000, scoped, tag = 'internal scratch']
  %s0 = inlined_call_operand.vmem [shape: f32[8,100], index: 0, kind: input, shape index: {}]
  %s1 = inlined_call_operand.vmem [shape: f32[100,100], index: 1, kind: input, shape index: {}]
  %s2 = inlined_call_operand.vmem [shape: f32[1,100], index: 2, kind: input, shape index: {}]
  %s3 = inlined_call_operand.vmem [shape: f32[100,10], index: 3, kind: input, shape index: {}]
  %s4 = inlined_call_operand.vmem [shape: f32[1,10], index: 4, kind: input, shape index: {}]
  %s5 = inlined_call_operand.hbm [shape: f32[8,10], index: 5, kind: output, shape index: {}]
  %s6 = sld [smem:[#allocation0]]
  $region30: #{simple_module_forward.1} parent=0
    _
  %s8 = ssub.s32 1, %s6
  %s9 = scalar_select 0, %s8, %s6
  $region1: #{simple_module_forward.1} parent=0
    #allocation2 [shape = 'u8[4096]{0}', space=vmem, size = 0x1000, scoped, tag = 'output window, operand 0, single buffered']
    #allocation3 [shape = 's32[1]{0}', space=sflag, size = 0x4, scoped, tag = 'scoped memory for simple_module_forward.1']
    %10 = vsyncpa [#allocation3], 0
    // Predicated region
    $region2: #{simple_module_forward.1} parent=1 // pred_check
      _
    $region3: #{simple_module_forward.1} parent=1 // pred_check_branch
      %12 = sbr.rel (0) target = $region5
    $region4: #{simple_module_forward.1} parent=1 // pred_region
      _
    $region5: #{simple_module_forward.1} parent=1 // pred_fallthru
      _
    // Predicated region
    $region6: #{simple_module_forward.1} parent=1 // pred_check
      _
    $region7: #{simple_module_forward.1} parent=1 // pred_check_branch
      %14 = sbr.rel (0) target = $region9
    $region8: #{simple_module_forward.1} parent=1 // pred_region
      _
    $region9: #{simple_module_forward.1} parent=1 // pred_fallthru
      _
    // Predicated region
    $region10: #{simple_module_forward.1} parent=1 // pred_check
      _
    $region11: #{simple_module_forward.1} parent=1 // pred_check_branch
      %16 = sbr.rel (0) target = $region13
    $region12: #{simple_module_forward.1} parent=1 // pred_region
      _
    $region13: #{simple_module_forward.1} parent=1 // pred_fallthru
      _
    // Predicated region
    $region14: #{simple_module_forward.1} parent=1 // pred_check
      _
    $region15: #{simple_module_forward.1} parent=1 // pred_check_branch
      %18 = sbr.rel (0) target = $region17
    $region16: #{simple_module_forward.1} parent=1 // pred_region
      _
    $region17: #{simple_module_forward.1} parent=1 // pred_fallthru
      _
    // Predicated region
    $region18: #{simple_module_forward.1} parent=1 // pred_check
      _
    $region19: #{simple_module_forward.1} parent=1 // pred_check_branch
      %20 = sbr.rel (0) target = $region21
    $region20: #{simple_module_forward.1} parent=1 // pred_region
      _
    $region21: #{simple_module_forward.1} parent=1 // pred_fallthru
      _
    %v21 = vld [vmem:[%s0] sm:$0xff]
    %v22 = vld [vmem:[%s1] sm:$0xff]
    %v23 = vld [vmem:[%s1 + $0x8] sm:$0xff]
    %v24 = vld [vmem:[%s1 + $0x10] sm:$0xff]
    %v25 = vld [vmem:[%s1 + $0x18] sm:$0xff]
    %v26 = vld [vmem:[%s1 + $0x20] sm:$0xff]
    %v27 = vld [vmem:[%s1 + $0x28] sm:$0xff]
    %v28 = vld [vmem:[%s1 + $0x30] sm:$0xff]
    %v29 = vld [vmem:[%s1 + $0x38] sm:$0xff]
    %v30 = vld [vmem:[%s1 + $0x40] sm:$0xff]
    %v31 = vld [vmem:[%s1 + $0x48] sm:$0xff]
    %v32 = vld [vmem:[%s1 + $0x50] sm:$0xff]
    %v33 = vld [vmem:[%s1 + $0x58] sm:$0xff]
    %v34 = vld [vmem:[%s1 + $0x60] sm:$0xf]
    %v35 = vld [vmem:[%s2] sm:$0x1]
    %v37 = vlaneseq
    %v38 = vshrl.u32 %v37, 7
    %v39 = vsub.s32 0, %v38
    %v40 = vrot.slane %v35, %v39
    %vm42 = vcmask 818176
    %v44 = vsel %vm42, %v21, 0
    %vm46 = vcmask 1043456
    %v48 = vsel %vm46, %v34, 0
    %50 = vmatprep.subr.mxu0 0.0
    %51 = vmatpush1.msra.mxu0 %v22
    %52 = vmatprep.subr.mxu0 0.0
    %53 = vmatpush1.msra.mxu0 %v23
    %54 = vmatprep.subr.mxu0 0.0
    %55 = vmatpush1.msra.mxu0 %v24
    %56 = vmatprep.subr.mxu0 0.0
    %57 = vmatpush1.msra.mxu0 %v25
    %58 = vmatprep.subr.mxu0 0.0
    %59 = vmatpush1.msra.mxu0 %v26
    %60 = vmatprep.subr.mxu0 0.0
    %61 = vmatpush1.msra.mxu0 %v27
    %62 = vmatprep.subr.mxu0 0.0
    %63 = vmatpush1.msra.mxu0 %v28
    %64 = vmatprep.subr.mxu0 0.0
    %65 = vmatpush1.msra.mxu0 %v29
    %66 = vmatprep.subr.mxu0 0.0
    %67 = vmatpush1.msra.mxu0 %v30
    %68 = vmatprep.subr.mxu0 0.0
    %69 = vmatpush1.msra.mxu0 %v31
    %70 = vmatprep.subr.mxu0 0.0
    %71 = vmatpush1.msra.mxu0 %v32
    %72 = vmatprep.subr.mxu0 0.0
    %73 = vmatpush1.msra.mxu0 %v33
    %74 = vmatprep.subr.mxu0 0.0
    %75 = vmatpush1.msra.mxu0 %v48
    %76 = vmatprep.subr.mxu0 0.0
    %77 = vmatpush1.msra.mxu0 0.0
    %78 = vmatprep.subr.mxu0 0.0
    %79 = vmatpush1.msra.mxu0 0.0
    %80 = vmatprep.subr.mxu0 0.0
    %81 = vmatpush1.msra.mxu0 0.0
    %82 = vmatprep.subr.mxu0 0.0
    %83 = vmatpush1.msra.mxu0 0.0
    %84 = vmatprep.subr.mxu0 0.0
    %85 = vmatpush1.msra.mxu0 0.0
    %86 = vmatprep.subr.mxu0 0.0
    %87 = vmatpush1.msra.mxu0 0.0
    %88 = vmatprep.subr.mxu0 0.0
    %89 = vmatpush1.msra.mxu0 0.0
    %90 = vmatprep.subr.mxu0 0.0
    %91 = vmatpush1.msra.mxu0 0.0
    %92 = vmatprep.subr.mxu0 0.0
    %93 = vmatpush1.msra.mxu0 0.0
    %94 = vmatprep.subr.mxu0 0.0
    %95 = vmatpush1.msra.mxu0 0.0
    %96 = vmatprep.subr.mxu0 0.0
    %97 = vmatpush1.msra.mxu0 0.0
    %98 = vmatprep.subr.mxu0 0.0
    %99 = vmatpush1.msra.mxu0 0.0
    %100 = vmatprep.subr.mxu0 0.0
    %101 = vmatpush1.msra.mxu0 0.0
    %102 = vmatprep.subr.mxu0 0.0
    %103 = vmatpush1.msra.mxu0 0.0
    %104 = vmatprep.subr.mxu0 0.0
    %105 = vmatpush1.msra.mxu0 0.0
    %106 = vmatprep.subr.mxu0 0.0
    %107 = vmatpush1.msra.mxu0 0.0
    %108 = vmatprep.subr.mxu0 0.0
    %109 = vmatpush1.msra.mxu0 0.0
    %110 = vmatprep.subr.mxu0 0.0
    %111 = vmatpush1.msra.mxu0 0.0
    %112 = vmatprep.subr.mxu0 0.0
    %113 = vmatpush1.msra.mxu0 0.0
    %114 = vmatprep.mubr.f32.mxu0 0.0
    %115 = vmatmul.mubr.f32.gmra.mrb[0].mxu0 %v44
    %v116 = vpop.f32.mrb[0].mxu0
    %v117 = vadd.f32 %v40, %v116
    %v118 = vpop.f32.mrb[0].mxu0
    %119 = vdwg.mxu0
    %v120 = vmax.f32 %v117, 0.0
    %v121 = vadd.f32 %v120, %v21
    %v122 = vld [vmem:[%s3] sm:$0xff]
    %v123 = vld [vmem:[%s3 + $0x8] sm:$0xff]
    %v124 = vld [vmem:[%s3 + $0x10] sm:$0xff]
    %v125 = vld [vmem:[%s3 + $0x18] sm:$0xff]
    %v126 = vld [vmem:[%s3 + $0x20] sm:$0xff]
    %v127 = vld [vmem:[%s3 + $0x28] sm:$0xff]
    %v128 = vld [vmem:[%s3 + $0x30] sm:$0xff]
    %v129 = vld [vmem:[%s3 + $0x38] sm:$0xff]
    %v130 = vld [vmem:[%s3 + $0x40] sm:$0xff]
    %v131 = vld [vmem:[%s3 + $0x48] sm:$0xff]
    %v132 = vld [vmem:[%s3 + $0x50] sm:$0xff]
    %v133 = vld [vmem:[%s3 + $0x58] sm:$0xff]
    %v134 = vld [vmem:[%s3 + $0x60] sm:$0xf]
    %v135 = vld [vmem:[%s4] sm:$0x1]
    %v137 = vlaneseq
    %v138 = vshrl.u32 %v137, 7
    %v139 = vsub.s32 0, %v138
    %v140 = vrot.slane %v135, %v139
    %v143 = vsel %vm42, %v121, 0
    %v146 = vsel %vm46, %v134, 0
    %148 = vmatprep.subr.mxu0 0.0
    %149 = vmatpush1.msra.mxu0 %v122
    %150 = vmatprep.subr.mxu0 0.0
    %151 = vmatpush1.msra.mxu0 %v123
    %152 = vmatprep.subr.mxu0 0.0
    %153 = vmatpush1.msra.mxu0 %v124
    %154 = vmatprep.subr.mxu0 0.0
    %155 = vmatpush1.msra.mxu0 %v125
    %156 = vmatprep.subr.mxu0 0.0
    %157 = vmatpush1.msra.mxu0 %v126
    %158 = vmatprep.subr.mxu0 0.0
    %159 = vmatpush1.msra.mxu0 %v127
    %160 = vmatprep.subr.mxu0 0.0
    %161 = vmatpush1.msra.mxu0 %v128
    %162 = vmatprep.subr.mxu0 0.0
    %163 = vmatpush1.msra.mxu0 %v129
    %164 = vmatprep.subr.mxu0 0.0
    %165 = vmatpush1.msra.mxu0 %v130
    %166 = vmatprep.subr.mxu0 0.0
    %167 = vmatpush1.msra.mxu0 %v131
    %168 = vmatprep.subr.mxu0 0.0
    %169 = vmatpush1.msra.mxu0 %v132
    %170 = vmatprep.subr.mxu0 0.0
    %171 = vmatpush1.msra.mxu0 %v133
    %172 = vmatprep.subr.mxu0 0.0
    %173 = vmatpush1.msra.mxu0 %v146
    %174 = vmatprep.subr.mxu0 0.0
    %175 = vmatpush1.msra.mxu0 0.0
    %176 = vmatprep.subr.mxu0 0.0
    %177 = vmatpush1.msra.mxu0 0.0
    %178 = vmatprep.subr.mxu0 0.0
    %179 = vmatpush1.msra.mxu0 0.0
    %180 = vmatprep.subr.mxu0 0.0
    %181 = vmatpush1.msra.mxu0 0.0
    %182 = vmatprep.subr.mxu0 0.0
    %183 = vmatpush1.msra.mxu0 0.0
    %184 = vmatprep.subr.mxu0 0.0
    %185 = vmatpush1.msra.mxu0 0.0
    %186 = vmatprep.subr.mxu0 0.0
    %187 = vmatpush1.msra.mxu0 0.0
    %188 = vmatprep.subr.mxu0 0.0
    %189 = vmatpush1.msra.mxu0 0.0
    %190 = vmatprep.subr.mxu0 0.0
    %191 = vmatpush1.msra.mxu0 0.0
    %192 = vmatprep.subr.mxu0 0.0
    %193 = vmatpush1.msra.mxu0 0.0
    %194 = vmatprep.subr.mxu0 0.0
    %195 = vmatpush1.msra.mxu0 0.0
    %196 = vmatprep.subr.mxu0 0.0
    %197 = vmatpush1.msra.mxu0 0.0
    %198 = vmatprep.subr.mxu0 0.0
    %199 = vmatpush1.msra.mxu0 0.0
    %200 = vmatprep.subr.mxu0 0.0
    %201 = vmatpush1.msra.mxu0 0.0
    %202 = vmatprep.subr.mxu0 0.0
    %203 = vmatpush1.msra.mxu0 0.0
    %204 = vmatprep.subr.mxu0 0.0
    %205 = vmatpush1.msra.mxu0 0.0
    %206 = vmatprep.subr.mxu0 0.0
    %207 = vmatpush1.msra.mxu0 0.0
    %208 = vmatprep.subr.mxu0 0.0
    %209 = vmatpush1.msra.mxu0 0.0
    %210 = vmatprep.subr.mxu0 0.0
    %211 = vmatpush1.msra.mxu0 0.0
    %212 = vmatprep.mubr.f32.mxu0 0.0
    %213 = vmatmul.mubr.f32.gmra.mrb[0].mxu0 %v143
    %v214 = vpop.f32.mrb[0].mxu0
    %v215 = vadd.f32 %v140, %v214
    %v216 = vpop.f32.mrb[0].mxu0
    %217 = vdwg.mxu0
    %vm218 = vcmask 80896
    %219 = vst.msk [vmem:[#allocation2] sm:$0xff] %vm218, %v215
    // Predicated region
    $region22: #{simple_module_forward.1} parent=1 // pred_check
      _
    $region23: #{simple_module_forward.1} parent=1 // pred_check_branch
      %221 = sbr.rel (0) target = $region25
    $region24: #{simple_module_forward.1} parent=1 // pred_region
      %s223 = ssub.s32 128, 128
      %224 = vsyncadd [#allocation3], %s223
      %s226 = sshll.u32 [#allocation2], 4
      %s227 = int_to_ptr.vmem [resolvable:$true] %s226
      %229 = dma.vmem_to_hbm [thread:$0]  %s227, 128, %s5, [#allocation3]
    $region25: #{simple_module_forward.1} parent=1 // pred_fallthru
      _
    // Predicated region
    $region26: #{simple_module_forward.1} parent=1 // pred_check
      _
    $region27: #{simple_module_forward.1} parent=1 // pred_check_branch
      %231 = sbr.rel (0) target = $region29
    $region28: #{simple_module_forward.1} parent=1 // pred_region
      %232 = dma.done [#allocation3], 128
    $region29: #{simple_module_forward.1} parent=1 // pred_fallthru
      _
    %233 = vsyncpa [#allocation3], 1

</llo_original>
